<compile_context>
chip_gen: v7x
topology: tpu7x:2x2x1
jax: 0.10.0
libtpu: 0.0.40
codegen_flags: <defaults>
</compile_context>

<pallas_src>
import jax
import jax.numpy as jnp
from jax.experimental import pallas as pl
from jax.experimental.pallas import tpu as pltpu


def _make_kernel(S, K, dAR):
    """Kernel for static sequence length S, kernel size K, input width dAR."""

    def kernel(pos_ref, x_ref, w_ref, b_ref, out_ref, xcat_ref):
        # pos_ref:  (R, 1) int32   position within its sequence (r % S); block-invariant
        # x_ref:    (R, dAR)       input rows (bf16 or f32)
        # w_ref:    (K*dAR, dEnc)  im2col weights, equalized scale folded in
        # b_ref:    (1, dEnc) f32  bias, equalized scale folded in
        # out_ref:  (R, dEnc)
        # xcat_ref: (R, K*dAR)     im2col scratch (same dtype as x)
        x = x_ref[...]
        pos = pos_ref[...]

        # Tap j = K-1 (shift d = 0): the unshifted input.
        xcat_ref[:, (K - 1) * dAR: K * dAR] = x

        if K > 1:
            # Single hoisted upcast; rolls are done in f32 (well-supported sublane
            # rotation on the XLU), bf16<->f32 round-trips are exact.
            x32 = x.astype(jnp.float32)
            for j in range(K - 1):
                d = K - 1 - j  # causal shift for this tap, d in [1, K-1]
                shifted = pltpu.roll(x32, shift=d, axis=0)       # row r <- row r-d (wraps)
                # Zero contributions that would cross a sequence boundary
                # (this also kills the wrapped rows): keep only pos >= d.
                piece = jnp.where(pos >= d, shifted, 0.0)
                xcat_ref[:, j * dAR: (j + 1) * dAR] = piece.astype(x.dtype)

        # One fused matmul over the whole im2col block, f32 accumulation.
        y = jnp.dot(xcat_ref[...], w_ref[...], preferred_element_type=jnp.float32)
        out_ref[...] = (y + b_ref[...]).astype(out_ref.dtype)

    return kernel


def _vmem_budget():
    """Per-step working-set budget and scoped VMEM limit, per generation."""
    try:
        cap = int(pltpu.get_tpu_info().vmem_capacity_bytes)
    except Exception:
        cap = 64 * 1024 * 1024  # conservative (v7x per-core VMEM)
    budget = max(4 << 20, min(cap // 3, 40 << 20))
    limit = max(budget + (8 << 20), min((cap * 3) // 4, 100 << 20))
    return budget, limit


def _pick_block_batches(N, S, dAR, dEnc, K, x_isz, o_isz, budget_bytes):
    """Largest batch-block size whose per-step working set fits the budget,
    preferring a grid with >= 2 steps (v7x megacore)."""

    def working_set(bn):
        R = bn * S
        ws = (2 * R * dAR * x_isz            # x block (double buffered)
              + 2 * R * dEnc * o_isz         # out block (double buffered)
              + 2 * R * 4                    # pos block
              + 2 * K * dAR * dEnc * x_isz   # weights (pipeline allocates 2 bufs)
              + 2 * dEnc * 4                 # bias
              + R * K * dAR * x_isz          # im2col scratch
              + R * dEnc * 4                 # f32 matmul result
              + 2 * R * dAR * 4)             # f32 roll/mask temporaries
        return int(ws * 1.25)                # slack for vregs / spill

    divisors = [d for d in range(1, N + 1) if N % d == 0]
    aligned = [d for d in divisors if (d * S) % 8 == 0]      # sublane-aligned row block
    fits = [d for d in aligned if working_set(d) <= budget_bytes]
    multi = [d for d in fits if N // d >= 2]
    if multi:
        return max(multi)
    if fits:
        return max(fits)
    if aligned:
        return min(aligned)
    return N  # full-array fallback (block shape == array dims is always legal)


def shifted_conv_forward(x, weight, bias, kernel_size, block_n=None, use_bf16=True):
    """
    x:      (N, S, dAR)    float32
    weight: (dEnc, dAR, K) float32   -- PyTorch nn.Conv1d weight layout
    bias:   (dEnc,)        float32
    Returns (N, S, dEnc) == ShiftedConv(dAR, dEnc, K).forward(x)
    (EqualizedConv1d, i.e. (conv(x) + bias) * sqrt(2/(dAR*K))).
    """
    N, S, dAR = x.shape
    dEnc, dAR_w, K = weight.shape
    assert K == kernel_size and dAR_w == dAR

    out_dtype = x.dtype
    mm_dtype = jnp.bfloat16 if use_bf16 else jnp.float32

    # Fold the equalized-lr scale into the weights / bias (wrapper side, free).
    scale = (2.0 / (dAR * K)) ** 0.5
    # im2col weights: tap j occupies rows [j*dAR, (j+1)*dAR): W2[j*dAR+c, e] = w[e, c, j]*scale
    w2 = (jnp.transpose(weight, (2, 1, 0)).reshape(K * dAR, dEnc) * scale).astype(mm_dtype)
    b2 = (bias.astype(jnp.float32) * scale).reshape(1, dEnc)

    x2d = x.reshape(N * S, dAR).astype(mm_dtype)

    budget, vmem_limit = _vmem_budget()
    x_isz = 2 if use_bf16 else x.dtype.itemsize
    o_isz = jnp.zeros((), out_dtype).dtype.itemsize
    if (block_n is not None and N % block_n == 0
            and ((block_n * S) % 8 == 0 or block_n == N)):
        bN = block_n
    else:
        bN = _pick_block_batches(N, S, dAR, dEnc, K, x_isz, o_isz, budget)
    R = bN * S

    # Position-in-sequence per flattened row of a block (same for every block):
    # precomputed so there is no in-kernel integer modulo.
    pos = jnp.tile(jnp.arange(S, dtype=jnp.int32), bN).reshape(R, 1)

    kernel = _make_kernel(S, K, dAR)
    out2d = pl.pallas_call(
        kernel,
        out_shape=jax.ShapeDtypeStruct((N * S, dEnc), out_dtype),
        grid_spec=pltpu.PrefetchScalarGridSpec(
            num_scalar_prefetch=0,
            grid=(N // bN,),
            in_specs=[
                pl.BlockSpec((R, 1), lambda n: (0, 0)),            # pos (block-invariant)
                pl.BlockSpec((R, dAR), lambda n: (n, 0)),          # x rows for this block
                pl.BlockSpec((K * dAR, dEnc), lambda n: (0, 0)),   # im2col weights
                pl.BlockSpec((1, dEnc), lambda n: (0, 0)),         # bias
            ],
            out_specs=pl.BlockSpec((R, dEnc), lambda n: (n, 0)),
            scratch_shapes=[pltpu.VMEM((R, K * dAR), mm_dtype)],   # im2col buffer
        ),
        compiler_params=pltpu.CompilerParams(
            dimension_semantics=("parallel",),
            vmem_limit_bytes=vmem_limit,
        ),
    )(pos, x2d, w2, b2)

    return out2d.reshape(N, S, dEnc)


def _reference(x, weight, bias, K):
    """Pure-JAX reference of ShiftedConv.forward (causal conv1d + equalized scale)."""
    N, S, dAR = x.shape
    dEnc = weight.shape[0]
    scale = (2.0 / (dAR * K)) ** 0.5
    xp = jnp.concatenate([jnp.zeros((N, K - 1, dAR), x.dtype), x], axis=1)
    out = jnp.zeros((N, S, dEnc), jnp.float32)
    for j in range(K):
        out = out + jnp.einsum("nta,ea->nte", xp[:, j:j + S, :], weight[:, :, j],
                               preferred_element_type=jnp.float32)
    return ((out + bias[None, None, :]) * scale).astype(x.dtype)


if __name__ == "__main__":
    # Small shapes consistent with the module's forward.
    N, S = 4, 16
    dimOutputAR = 32
    dimOutputEncoder = 64
    kernelSize = 4

    key = jax.random.PRNGKey(0)
    kx, kw, kb = jax.random.split(key, 3)

    x = jax.random.normal(kx, (N, S, dimOutputAR), dtype=jnp.float32)
    # EqualizedConv1d init: weight ~ N(0,1); bias is zero-init in the module but
    # use a small nonzero bias here to exercise the bias path.
    weight = jax.random.normal(kw, (dimOutputEncoder, dimOutputAR, kernelSize),
                               dtype=jnp.float32)
    bias = 0.1 * jax.random.normal(kb, (dimOutputEncoder,), dtype=jnp.float32)

    # Default (bf16 matmul) path and an f32 path for a tight structural check.
    out = shifted_conv_forward(x, weight, bias, kernelSize)
    out = jax.block_until_ready(out)
    out_f32 = shifted_conv_forward(x, weight, bias, kernelSize, use_bf16=False)
    out_f32 = jax.block_until_ready(out_f32)

    ref = _reference(x, weight, bias, kernelSize)
    assert out.shape == (N, S, dimOutputEncoder)
    assert jnp.allclose(out_f32, ref, atol=1e-3, rtol=1e-3), "f32 path mismatch"
    assert jnp.allclose(out, ref, atol=5e-2, rtol=5e-2), "bf16 path mismatch"

    print("KERNEL_OK")
</pallas_src>

<mosaic_0001>
module attributes {stable_mosaic.version = 11 : i64} {
  func.func @kernel(%arg0: i32, %arg1: memref<32x1xi32, #tpu.memory_space<vmem>>, %arg2: memref<32x32xbf16, #tpu.memory_space<vmem>>, %arg3: memref<128x64xbf16, #tpu.memory_space<vmem>>, %arg4: memref<1x64xf32, #tpu.memory_space<vmem>>, %arg5: memref<32x64xf32, #tpu.memory_space<vmem>>, %arg6: memref<32x128xbf16, #tpu.memory_space<vmem>>) attributes {dimension_semantics = [#tpu.dimension_semantics<parallel>], iteration_bounds = array<i64: 2>, scalar_prefetch = 0 : i64, scratch_operands = 1 : i64, tpu.core_type = #tpu.core_type<tc>, window_params = [{pipeline_mode = #tpu.pipeline_mode<synchronous>, transform_indices = @transform_0, window_bounds = array<i64: 32, 1>}, {transform_indices = @transform_1, window_bounds = array<i64: 32, 32>}, {pipeline_mode = #tpu.pipeline_mode<synchronous>, transform_indices = @transform_2, window_bounds = array<i64: 128, 64>}, {pipeline_mode = #tpu.pipeline_mode<synchronous>, transform_indices = @transform_3, window_bounds = array<i64: 1, 64>}, {transform_indices = @transform_4, window_bounds = array<i64: 32, 64>}]} {
    %c0 = arith.constant 0 : index
    %c0_0 = arith.constant 0 : index
    %0 = vector.load %arg2[%c0, %c0_0] : memref<32x32xbf16, #tpu.memory_space<vmem>>, vector<32x32xbf16>
    %c0_1 = arith.constant 0 : index
    %c0_2 = arith.constant 0 : index
    %1 = vector.load %arg1[%c0_1, %c0_2] : memref<32x1xi32, #tpu.memory_space<vmem>>, vector<32x1xi32>
    %c0_3 = arith.constant 0 : index
    %c96 = arith.constant 96 : index
    %2 = vector.load %arg6[%c0_3, %c96] : memref<32x128xbf16, #tpu.memory_space<vmem>>, vector<32x32xbf16>
    tpu.vector_store %arg6[%c0_3, %c96], %0 {strides = array<i32>} : memref<32x128xbf16, #tpu.memory_space<vmem>>, vector<32x32xbf16>,
    %3 = arith.extf %0 : vector<32x32xbf16> to vector<32x32xf32>
    %c3_i32 = arith.constant 3 : i32
    %4 = tpu.dynamic_rotate %3 by %c3_i32 dim 0 : vector<32x32xf32>, i32 -> vector<32x32xf32>
    %c3_i32_4 = arith.constant 3 : i32
    %5 = vector.broadcast %c3_i32_4 : i32 to vector<32x1xi32>
    %6 = arith.cmpi sge, %1, %5 : vector<32x1xi32>
    %cst = arith.constant 0.000000e+00 : f32
    %7 = vector.shape_cast %6 : vector<32x1xi1> to vector<32x1xi1>
    %8 = vector.broadcast %7 : vector<32x1xi1> to vector<32x32xi1>
    %9 = vector.broadcast %cst : f32 to vector<32x32xf32>
    %10 = arith.select %8, %4, %9 : vector<32x32xi1>, vector<32x32xf32>
    %11 = arith.truncf %10 : vector<32x32xf32> to vector<32x32xbf16>
    %c0_5 = arith.constant 0 : index
    %c0_6 = arith.constant 0 : index
    %12 = vector.load %arg6[%c0_5, %c0_6] : memref<32x128xbf16, #tpu.memory_space<vmem>>, vector<32x32xbf16>
    tpu.vector_store %arg6[%c0_5, %c0_6], %11 {strides = array<i32>} : memref<32x128xbf16, #tpu.memory_space<vmem>>, vector<32x32xbf16>,
    %c2_i32 = arith.constant 2 : i32
    %13 = tpu.dynamic_rotate %3 by %c2_i32 dim 0 : vector<32x32xf32>, i32 -> vector<32x32xf32>
    %c2_i32_7 = arith.constant 2 : i32
    %14 = vector.broadcast %c2_i32_7 : i32 to vector<32x1xi32>
    %15 = arith.cmpi sge, %1, %14 : vector<32x1xi32>
    %cst_8 = arith.constant 0.000000e+00 : f32
    %16 = vector.shape_cast %15 : vector<32x1xi1> to vector<32x1xi1>
    %17 = vector.broadcast %16 : vector<32x1xi1> to vector<32x32xi1>
    %18 = vector.broadcast %cst_8 : f32 to vector<32x32xf32>
    %19 = arith.select %17, %13, %18 : vector<32x32xi1>, vector<32x32xf32>
    %20 = arith.truncf %19 : vector<32x32xf32> to vector<32x32xbf16>
    %c0_9 = arith.constant 0 : index
    %c32 = arith.constant 32 : index
    %21 = vector.load %arg6[%c0_9, %c32] : memref<32x128xbf16, #tpu.memory_space<vmem>>, vector<32x32xbf16>
    tpu.vector_store %arg6[%c0_9, %c32], %20 {strides = array<i32>} : memref<32x128xbf16, #tpu.memory_space<vmem>>, vector<32x32xbf16>,
    %c1_i32 = arith.constant 1 : i32
    %22 = tpu.dynamic_rotate %3 by %c1_i32 dim 0 : vector<32x32xf32>, i32 -> vector<32x32xf32>
    %c1_i32_10 = arith.constant 1 : i32
    %23 = vector.broadcast %c1_i32_10 : i32 to vector<32x1xi32>
    %24 = arith.cmpi sge, %1, %23 : vector<32x1xi32>
    %cst_11 = arith.constant 0.000000e+00 : f32
    %25 = vector.shape_cast %24 : vector<32x1xi1> to vector<32x1xi1>
    %26 = vector.broadcast %25 : vector<32x1xi1> to vector<32x32xi1>
    %27 = vector.broadcast %cst_11 : f32 to vector<32x32xf32>
    %28 = arith.select %26, %22, %27 : vector<32x32xi1>, vector<32x32xf32>
    %29 = arith.truncf %28 : vector<32x32xf32> to vector<32x32xbf16>
    %c0_12 = arith.constant 0 : index
    %c64 = arith.constant 64 : index
    %30 = vector.load %arg6[%c0_12, %c64] : memref<32x128xbf16, #tpu.memory_space<vmem>>, vector<32x32xbf16>
    tpu.vector_store %arg6[%c0_12, %c64], %29 {strides = array<i32>} : memref<32x128xbf16, #tpu.memory_space<vmem>>, vector<32x32xbf16>,
    %c0_13 = arith.constant 0 : index
    %c0_14 = arith.constant 0 : index
    %31 = vector.load %arg6[%c0_13, %c0_14] : memref<32x128xbf16, #tpu.memory_space<vmem>>, vector<32x128xbf16>
    %c0_15 = arith.constant 0 : index
    %c0_16 = arith.constant 0 : index
    %32 = vector.load %arg3[%c0_15, %c0_16] : memref<128x64xbf16, #tpu.memory_space<vmem>>, vector<128x64xbf16>
    %cst_17 = arith.constant dense<0.000000e+00> : vector<32x64xf32>
    %33 = tpu.matmul %31, %32, %cst_17 {dimension_numbers = #tpu.dot_dimension_numbers<[1], [0], [0], [1], [0, 0, 1, 1], [], []>} : vector<32x128xbf16>, vector<128x64xbf16>, vector<32x64xf32> -> vector<32x64xf32>
    %c0_18 = arith.constant 0 : index
    %c0_19 = arith.constant 0 : index
    %34 = vector.load %arg4[%c0_18, %c0_19] : memref<1x64xf32, #tpu.memory_space<vmem>>, vector<1x64xf32>
    %35 = vector.broadcast %34 : vector<1x64xf32> to vector<32x64xf32>
    %36 = arith.addf %33, %35 : vector<32x64xf32>
    %c0_20 = arith.constant 0 : index
    %c0_21 = arith.constant 0 : index
    %37 = vector.load %arg5[%c0_20, %c0_21] : memref<32x64xf32, #tpu.memory_space<vmem>>, vector<32x64xf32>
    tpu.vector_store %arg5[%c0_20, %c0_21], %36 {strides = array<i32>} : memref<32x64xf32, #tpu.memory_space<vmem>>, vector<32x64xf32>,
    return
  }
  func.func @transform_0(%arg0: i32) -> (i32, i32) {
    %c0_i32 = arith.constant 0 : i32
    %c0_i32_0 = arith.constant 0 : i32
    %c0_i32_1 = arith.constant 0 : i32
    return %c0_i32, %c0_i32_0 : i32, i32
  }
  func.func @transform_1(%arg0: i32) -> (i32, i32) {
    %c0_i32 = arith.constant 0 : i32
    %c0_i32_0 = arith.constant 0 : i32
    return %arg0, %c0_i32 : i32, i32
  }
  func.func @transform_2(%arg0: i32) -> (i32, i32) {
    %c0_i32 = arith.constant 0 : i32
    %c0_i32_0 = arith.constant 0 : i32
    %c0_i32_1 = arith.constant 0 : i32
    return %c0_i32, %c0_i32_0 : i32, i32
  }
  func.func @transform_3(%arg0: i32) -> (i32, i32) {
    %c0_i32 = arith.constant 0 : i32
    %c0_i32_0 = arith.constant 0 : i32
    %c0_i32_1 = arith.constant 0 : i32
    return %c0_i32, %c0_i32_0 : i32, i32
  }
  func.func @transform_4(%arg0: i32) -> (i32, i32) {
    %c0_i32 = arith.constant 0 : i32
    %c0_i32_0 = arith.constant 0 : i32
    return %arg0, %c0_i32 : i32, i32
  }
}

</mosaic_0001>

<llo_original>
// kernel: tpu_custom_call.1
$region0: #{tpu_custom_call.1}
  #allocation0 [shape = 'u32[]', space=smem, size = 0x4, offset = 0x4, fixed_abs, tag = 'smem constant byte address 0x4 - core index']
  #allocation1 [shape = 'u32[144,128]{1,0:T(1,128)}', space=vmem, size = 0x12000, scoped, tag = 'internal scratch']
  #allocation2 [shape = 'bf16[32,128]{1,0:T(16,128)(2,1)}', space=vmem, size = 0x2000, scoped, tag = 'scratch operand']
  %s0 = inlined_call_operand.vmem [shape: s32[32,1], index: 0, kind: input, shape index: {}]
  %s1 = inlined_call_operand.vmem [shape: bf16[64,32], index: 1, kind: input, shape index: {}]
  %s2 = inlined_call_operand.vmem [shape: bf16[128,64], index: 2, kind: input, shape index: {}]
  %s3 = inlined_call_operand.vmem [shape: f32[1,64], index: 3, kind: input, shape index: {}]
  %s4 = inlined_call_operand.hbm [shape: f32[64,64], index: 4, kind: output, shape index: {}]
  %s5 = sld [smem:[#allocation0]]
  $region49: #{tpu_custom_call.1} parent=0
    _
  %s7 = ssub.s32 1, %s5
  %s8 = scalar_select 0, %s7, %s5
  $region1: #{tpu_custom_call.1} parent=0
    #allocation3 [shape = 'u8[32768]{0}', space=vmem, size = 0x8000, scoped, tag = 'output window, operand 0']
    #allocation4 [shape = 's32[2]{0}', space=sflag, size = 0x8, scoped, tag = 'scoped memory for tpu_custom_call.1']
    %9 = vsyncpa [#allocation4], 0
    %s10 = scalar_lea.sflag [#allocation4], 1
    %11 = vsyncpa %s10, 0
    loop: start=0, step=1, limit=4
    $region2: #{tpu_custom_call.1} parent=1 // loop_pre_header
      _
    $region3: #{tpu_custom_call.1} parent=1 // loop_header
      %s13 = sphi 0, %s17
      %p14 = scmp.ge.s32.totalorder %s13, 4
      %s21 = sphi 0, %s21
      %s23 = sphi 0, %s21
      %s24 = sphi 0, %s23
      %s38 = sphi 0, %s24
      %s44 = sphi 0, %s46
      %s47 = sphi 0, %s44
      %s48 = sphi 0, %s47
      %s64 = sphi 0, %s48
      %s68 = sphi 0, %s68
      %s70 = sphi 0, %s68
      %s71 = sphi 0, %s70
      %s85 = sphi 0, %s71
      %s89 = sphi 0, %s89
      %s91 = sphi 0, %s89
      %s92 = sphi 0, %s91
      %s106 = sphi 0, %s92
      %s112 = sphi 0, %s114
      %s115 = sphi 0, %s112
      %s116 = sphi 0, %s115
      %s132 = sphi 0, %s116
    $region4: #{tpu_custom_call.1} parent=1 // loop_header_branch
      %16 = sbr.rel (%p14) target = $region8
    $region5: #{tpu_custom_call.1} parent=1 // loop_body
      %s18 = ssub.s32 %s13, 1
      %s19 = ssub.s32 %s13, 2
      %s20 = sadd.s32 %s13, 1
      %s22 = sadd.s32 %s21, 1
      %p25 = scmp.eq.s32.totalorder %s13, 1
      %p26 = scmp.ne.s32.totalorder %s21, %s23
      %p27 = scmp.eq.s32.totalorder %s13, 0
      %p28 = por %p26, %p27
      %p29 = scmp.ne.s32.totalorder %s21, %s23
      %p30 = scmp.eq.s32.totalorder %s18, 1
      %p31 = por %p29, %p30
      %p32 = scmp.ne.s32.totalorder %s23, %s24
      %p33 = scmp.eq.s32.totalorder %s18, 0
      %p34 = por %p32, %p33
      %p35 = scmp.ne.s32.totalorder %s23, %s24
      %p36 = scmp.eq.s32.totalorder %s19, 1
      %p37 = por %p35, %p36
      %p39 = scmp.ne.s32.totalorder %s24, %s38
      %p40 = scmp.eq.s32.totalorder %s19, 0
      %p41 = por %p39, %p40
      %s42 = ssub.s32 %s13, %s20
      %p43 = scmp.eq.s32.totalorder %s42, 0
      %s45 = sadd.s32 %s44, 1
      %s46 = scalar_select %p43, %s44, %s45
      %p49 = pneg %p43
      %p50 = scmp.eq.s32.totalorder %s13, 1
      %p51 = por %p49, %p50
      %p52 = scmp.ne.s32.totalorder %s44, %s47
      %p53 = scmp.eq.s32.totalorder %s13, 0
      %p54 = por %p52, %p53
      %p55 = scmp.ne.s32.totalorder %s44, %s47
      %p56 = scmp.eq.s32.totalorder %s18, 1
      %p57 = por %p55, %p56
      %p58 = scmp.ne.s32.totalorder %s47, %s48
      %p59 = scmp.eq.s32.totalorder %s18, 0
      %p60 = por %p58, %p59
      %p61 = scmp.ne.s32.totalorder %s47, %s48
      %p62 = scmp.eq.s32.totalorder %s19, 1
      %p63 = por %p61, %p62
      %p65 = scmp.ne.s32.totalorder %s48, %s64
      %p66 = scmp.eq.s32.totalorder %s19, 0
      %p67 = por %p65, %p66
      %s69 = sadd.s32 %s68, 1
      %p72 = scmp.eq.s32.totalorder %s13, 1
      %p73 = scmp.ne.s32.totalorder %s68, %s70
      %p74 = scmp.eq.s32.totalorder %s13, 0
      %p75 = por %p73, %p74
      %p76 = scmp.ne.s32.totalorder %s68, %s70
      %p77 = scmp.eq.s32.totalorder %s18, 1
      %p78 = por %p76, %p77
      %p79 = scmp.ne.s32.totalorder %s70, %s71
      %p80 = scmp.eq.s32.totalorder %s18, 0
      %p81 = por %p79, %p80
      %p82 = scmp.ne.s32.totalorder %s70, %s71
      %p83 = scmp.eq.s32.totalorder %s19, 1
      %p84 = por %p82, %p83
      %p86 = scmp.ne.s32.totalorder %s71, %s85
      %p87 = scmp.eq.s32.totalorder %s19, 0
      %p88 = por %p86, %p87
      %s90 = sadd.s32 %s89, 1
      %p93 = scmp.eq.s32.totalorder %s13, 1
      %p94 = scmp.ne.s32.totalorder %s89, %s91
      %p95 = scmp.eq.s32.totalorder %s13, 0
      %p96 = por %p94, %p95
      %p97 = scmp.ne.s32.totalorder %s89, %s91
      %p98 = scmp.eq.s32.totalorder %s18, 1
      %p99 = por %p97, %p98
      %p100 = scmp.ne.s32.totalorder %s91, %s92
      %p101 = scmp.eq.s32.totalorder %s18, 0
      %p102 = por %p100, %p101
      %p103 = scmp.ne.s32.totalorder %s91, %s92
      %p104 = scmp.eq.s32.totalorder %s19, 1
      %p105 = por %p103, %p104
      %p107 = scmp.ne.s32.totalorder %s92, %s106
      %p108 = scmp.eq.s32.totalorder %s19, 0
      %p109 = por %p107, %p108
      %s110 = ssub.s32 %s13, %s20
      %p111 = scmp.eq.s32.totalorder %s110, 0
      %s113 = sadd.s32 %s112, 1
      %s114 = scalar_select %p111, %s112, %s113
      %p117 = pneg %p111
      %p118 = scmp.eq.s32.totalorder %s13, 1
      %p119 = por %p117, %p118
      %p120 = scmp.ne.s32.totalorder %s112, %s115
      %p121 = scmp.eq.s32.totalorder %s13, 0
      %p122 = por %p120, %p121
      %p123 = scmp.ne.s32.totalorder %s112, %s115
      %p124 = scmp.eq.s32.totalorder %s18, 1
      %p125 = por %p123, %p124
      %p126 = scmp.ne.s32.totalorder %s115, %s116
      %p127 = scmp.eq.s32.totalorder %s18, 0
      %p128 = por %p126, %p127
      %p129 = scmp.ne.s32.totalorder %s115, %s116
      %p130 = scmp.eq.s32.totalorder %s19, 1
      %p131 = por %p129, %p130
      %p133 = scmp.ne.s32.totalorder %s116, %s132
      %p134 = scmp.eq.s32.totalorder %s19, 0
      %p135 = por %p133, %p134
      %p136 = scmp.le.s32.totalorder 1, %s13
      %p137 = scmp.lt.s32.totalorder %s13, 3
      %p138 = pnand %p136, %p137
      %p139 = pneg %p138
      // Predicated region
      $region9: #{tpu_custom_call.1} parent=5 // pred_check
        _
      $region10: #{tpu_custom_call.1} parent=5 // pred_check_branch
        %141 = sbr.rel (%p138) target = $region12
      $region11: #{tpu_custom_call.1} parent=5 // pred_region
        %s142 = ssub.s32 %s13, 1
        // Predicated region
        $region13: #{tpu_custom_call.1} parent=11 // pred_check
          %p143 = pneg %p34
        $region14: #{tpu_custom_call.1} parent=11 // pred_check_branch
          %145 = sbr.rel (%p143) target = $region16
        $region15: #{tpu_custom_call.1} parent=11 // pred_region
          _
        $region16: #{tpu_custom_call.1} parent=11 // pred_fallthru
          _
        // Predicated region
        $region17: #{tpu_custom_call.1} parent=11 // pred_check
          %p146 = pneg %p81
        $region18: #{tpu_custom_call.1} parent=11 // pred_check_branch
          %148 = sbr.rel (%p146) target = $region20
        $region19: #{tpu_custom_call.1} parent=11 // pred_region
          _
        $region20: #{tpu_custom_call.1} parent=11 // pred_fallthru
          _
        // Predicated region
        $region21: #{tpu_custom_call.1} parent=11 // pred_check
          %p149 = pneg %p102
        $region22: #{tpu_custom_call.1} parent=11 // pred_check_branch
          %151 = sbr.rel (%p149) target = $region24
        $region23: #{tpu_custom_call.1} parent=11 // pred_region
          _
        $region24: #{tpu_custom_call.1} parent=11 // pred_fallthru
          _
      $region12: #{tpu_custom_call.1} parent=5 // pred_fallthru
        _
      %p152 = scmp.lt.s32.totalorder %s13, 2
      // Predicated region
      $region25: #{tpu_custom_call.1} parent=5 // pred_check
        %p153 = pneg %p152
      $region26: #{tpu_custom_call.1} parent=5 // pred_check_branch
        %155 = sbr.rel (%p153) target = $region28
      $region27: #{tpu_custom_call.1} parent=5 // pred_region
        // Predicated region
        $region29: #{tpu_custom_call.1} parent=27 // pred_check
          %p156 = pneg %p54
        $region30: #{tpu_custom_call.1} parent=27 // pred_check_branch
          %158 = sbr.rel (%p156) target = $region32
        $region31: #{tpu_custom_call.1} parent=27 // pred_region
          %s159 = smul.u32 4, %s13
          %p160 = scmp.lt.s32.totalorder %s159, 7
          %s161 = scalar_select %p160, %s159, 7
          %s162 = smul.addr %s161, 4
          %s163 = scalar_lea.vmem %s1, %s162
          %s164 = smul.u32 4, %s13
        $region32: #{tpu_custom_call.1} parent=27 // pred_fallthru
          _
      $region28: #{tpu_custom_call.1} parent=5 // pred_fallthru
        _
      %p165 = scmp.le.s32.totalorder 1, %s13
      %p166 = scmp.lt.s32.totalorder %s13, 3
      %p167 = pnand %p165, %p166
      %p168 = pneg %p167
      // Predicated region
      $region33: #{tpu_custom_call.1} parent=5 // pred_check
        _
      $region34: #{tpu_custom_call.1} parent=5 // pred_check_branch
        %170 = sbr.rel (%p167) target = $region36
      $region35: #{tpu_custom_call.1} parent=5 // pred_region
        %s171 = ssub.s32 %s13, 1
        %p172 = pneg %p34
        %p173 = pneg %p31
        %s174 = smul.u32 4, %s18
        %p175 = scmp.lt.s32.totalorder %s174, 7
        %s176 = scalar_select %p175, %s174, 7
        %s177 = smul.addr %s176, 4
        %s178 = scalar_lea.vmem %s1, %s177
        %p179 = pneg %p60
        %p180 = pneg %p57
        %p181 = pneg %p81
        %p182 = pneg %p78
        %p183 = pneg %p102
        %p184 = pneg %p99
        %p185 = pneg %p128
        %p186 = pneg %p125
        %s187 = sand.u32 %s115, 1
        %s188 = scalar_lea.sflag [#allocation4], %s187
        %s189 = sand.u32 %s115, 1
        %s190 = smul.addr %s189, 32
        %s191 = scalar_lea.vmem [#allocation3], %s190
        %s192 = smul.u32 4, %s18
        %p193 = scmp.lt.s32.totalorder %s192, 7
        %s194 = scalar_select %p193, %s192, 7
        %s195 = smul.addr %s194, 4
        %s196 = scalar_lea.vmem %s1, %s195
        %s197 = smul.u32 4, %s18
        %s198 = smul.u32 4, %s18
        %v200 = vld [vmem:[%s196] sm:$0xf]
        %v201 = vld [vmem:[%s196 + $0x4] sm:$0xf]
        %v202 = vld [vmem:[%s196 + $0x8] sm:$0xf]
        %v203 = vld [vmem:[%s196 + $0xc] sm:$0xf]
        %v204 = vld [vmem:[%s0] sm:$0xff]
        %v205 = vld [vmem:[%s0 + $0x8] sm:$0xff]
        %v206 = vld [vmem:[%s0 + $0x10] sm:$0xff]
        %v207 = vld [vmem:[%s0 + $0x18] sm:$0xff]
        %v212 = vunpack.c.l.b16 %v200
        %v213 = vunpack.c.l.b16 %v201
        %v214 = vunpack.c.l.b16 %v202
        %v215 = vunpack.c.l.b16 %v203
        %v216 = vpack.c.b16 %v213, %v212
        %v217 = vpack.c.b16 %v215, %v214
        %218 = vrot.lane.b32.xlu0 %v216, 96
        %v219 = vpop.permute.xlu0 %218
        %220 = vrot.lane.b32.xlu0 %v217, 96
        %v221 = vpop.permute.xlu0 %220
        %vm224 = vcmask 1048320
        %225 = vst.msk [vmem:[#allocation2] sm:$0xff] %vm224, %v219
        %226 = vst.msk [vmem:[#allocation2 + $0x8] sm:$0xff] %vm224, %v221
        %v227 = vunpack.c.l.bf16 %v200
        %v228 = vunpack.c.l.bf16 %v201
        %v229 = vunpack.c.l.bf16 %v202
        %v230 = vunpack.c.l.bf16 %v203
        %v231 = vrot.slane %v227, 5
        %v232 = vrot.slane %v228, 5
        %v233 = vrot.slane %v229, 5
        %v234 = vrot.slane %v230, 5
        %v235 = vlaneseq
        %v236 = vshrl.u32 %v235, 7
        %vm237 = vcmp.lt.s32.totalorder %v236, 3
        %v238 = vsel %vm237, %v233, %v234
        %v239 = vsel %vm237, %v232, %v233
        %v240 = vsel %vm237, %v231, %v232
        %v241 = vsel %vm237, %v234, %v231
        %vm242 = vcmp.ge.s32.totalorder %v204, 3
        %vm243 = vcmp.ge.s32.totalorder %v205, 3
        %vm244 = vcmp.ge.s32.totalorder %v206, 3
        %vm245 = vcmp.ge.s32.totalorder %v207, 3
        %v246 = vsel %vm242, 1, 0
        %v247 = vsel %vm243, 1, 0
        %v248 = vsel %vm244, 1, 0
        %v249 = vsel %vm245, 1, 0
        %250 = vset.pattern.permute.xlu0 0
        %251 = vperm.xlu0 %250, %v246
        %v252 = vpop.permute.xlu0 %251
        %253 = vset.pattern.permute.xlu0 0
        %254 = vperm.xlu0 %253, %v247
        %v255 = vpop.permute.xlu0 %254
        %256 = vset.pattern.permute.xlu0 0
        %257 = vperm.xlu0 %256, %v248
        %v258 = vpop.permute.xlu0 %257
        %259 = vset.pattern.permute.xlu0 0
        %260 = vperm.xlu0 %259, %v249
        %v261 = vpop.permute.xlu0 %260
        %vm262 = vcmp.eq.s32.totalorder %v252, 1
        %vm263 = vcmp.eq.s32.totalorder %v255, 1
        %vm264 = vcmp.eq.s32.totalorder %v258, 1
        %vm265 = vcmp.eq.s32.totalorder %v261, 1
        %v266 = vsel %vm262, %v241, 0.0
        %v267 = vsel %vm263, %v240, 0.0
        %v268 = vsel %vm264, %v239, 0.0
        %v269 = vsel %vm265, %v238, 0.0
        %v270 = vpack.c.bf16 %v267, %v266
        %v271 = vpack.c.bf16 %v269, %v268
        %vm272 = vcmask 261120
        %273 = vst.msk [vmem:[#allocation2] sm:$0xff] %vm272, %v270
        %274 = vst.msk [vmem:[#allocation2 + $0x8] sm:$0xff] %vm272, %v271
        %v275 = vrot.slane %v227, 6
        %v276 = vrot.slane %v228, 6
        %v277 = vrot.slane %v229, 6
        %v278 = vrot.slane %v230, 6
        %vm279 = vcmp.lt.s32.totalorder %v236, 2
        %v280 = vsel %vm279, %v277, %v278
        %v281 = vsel %vm279, %v276, %v277
        %v282 = vsel %vm279, %v275, %v276
        %v283 = vsel %vm279, %v278, %v275
        %vm284 = vcmp.ge.s32.totalorder %v204, 2
        %vm285 = vcmp.ge.s32.totalorder %v205, 2
        %vm286 = vcmp.ge.s32.totalorder %v206, 2
        %vm287 = vcmp.ge.s32.totalorder %v207, 2
        %v288 = vsel %vm284, 1, 0
        %v289 = vsel %vm285, 1, 0
        %v290 = vsel %vm286, 1, 0
        %v291 = vsel %vm287, 1, 0
        %292 = vset.pattern.permute.xlu0 0
        %293 = vperm.xlu0 %292, %v288
        %v294 = vpop.permute.xlu0 %293
        %295 = vset.pattern.permute.xlu0 0
        %296 = vperm.xlu0 %295, %v289
        %v297 = vpop.permute.xlu0 %296
        %298 = vset.pattern.permute.xlu0 0
        %299 = vperm.xlu0 %298, %v290
        %v300 = vpop.permute.xlu0 %299
        %301 = vset.pattern.permute.xlu0 0
        %302 = vperm.xlu0 %301, %v291
        %v303 = vpop.permute.xlu0 %302
        %vm304 = vcmp.eq.s32.totalorder %v294, 1
        %vm305 = vcmp.eq.s32.totalorder %v297, 1
        %vm306 = vcmp.eq.s32.totalorder %v300, 1
        %vm307 = vcmp.eq.s32.totalorder %v303, 1
        %v308 = vsel %vm304, %v283, 0.0
        %v309 = vsel %vm305, %v282, 0.0
        %v310 = vsel %vm306, %v281, 0.0
        %v311 = vsel %vm307, %v280, 0.0
        %v312 = vpack.c.bf16 %v309, %v308
        %v313 = vpack.c.bf16 %v311, %v310
        %316 = vrot.lane.b32.xlu0 %v312, 32
        %v317 = vpop.permute.xlu0 %316
        %318 = vrot.lane.b32.xlu0 %v313, 32
        %v319 = vpop.permute.xlu0 %318
        %vm322 = vcmask 523520
        %323 = vst.msk [vmem:[#allocation2] sm:$0xff] %vm322, %v317
        %324 = vst.msk [vmem:[#allocation2 + $0x8] sm:$0xff] %vm322, %v319
        %v325 = vrot.slane %v227, 7
        %v326 = vrot.slane %v228, 7
        %v327 = vrot.slane %v229, 7
        %v328 = vrot.slane %v230, 7
        %vm329 = vcmp.lt.s32.totalorder %v236, 1
        %v330 = vsel %vm329, %v327, %v328
        %v331 = vsel %vm329, %v326, %v327
        %v332 = vsel %vm329, %v325, %v326
        %v333 = vsel %vm329, %v328, %v325
        %vm334 = vcmp.ge.s32.totalorder %v204, 1
        %vm335 = vcmp.ge.s32.totalorder %v205, 1
        %vm336 = vcmp.ge.s32.totalorder %v206, 1
        %vm337 = vcmp.ge.s32.totalorder %v207, 1
        %v338 = vsel %vm334, 1, 0
        %v339 = vsel %vm335, 1, 0
        %v340 = vsel %vm336, 1, 0
        %v341 = vsel %vm337, 1, 0
        %342 = vset.pattern.permute.xlu0 0
        %343 = vperm.xlu0 %342, %v338
        %v344 = vpop.permute.xlu0 %343
        %345 = vset.pattern.permute.xlu0 0
        %346 = vperm.xlu0 %345, %v339
        %v347 = vpop.permute.xlu0 %346
        %348 = vset.pattern.permute.xlu0 0
        %349 = vperm.xlu0 %348, %v340
        %v350 = vpop.permute.xlu0 %349
        %351 = vset.pattern.permute.xlu0 0
        %352 = vperm.xlu0 %351, %v341
        %v353 = vpop.permute.xlu0 %352
        %vm354 = vcmp.eq.s32.totalorder %v344, 1
        %vm355 = vcmp.eq.s32.totalorder %v347, 1
        %vm356 = vcmp.eq.s32.totalorder %v350, 1
        %vm357 = vcmp.eq.s32.totalorder %v353, 1
        %v358 = vsel %vm354, %v333, 0.0
        %v359 = vsel %vm355, %v332, 0.0
        %v360 = vsel %vm356, %v331, 0.0
        %v361 = vsel %vm357, %v330, 0.0
        %v362 = vpack.c.bf16 %v359, %v358
        %v363 = vpack.c.bf16 %v361, %v360
        %366 = vrot.lane.b32.xlu0 %v362, 64
        %v367 = vpop.permute.xlu0 %366
        %368 = vrot.lane.b32.xlu0 %v363, 64
        %v369 = vpop.permute.xlu0 %368
        %vm372 = vcmask 785920
        %373 = vst.msk [vmem:[#allocation2] sm:$0xff] %vm372, %v367
        %374 = vst.msk [vmem:[#allocation2 + $0x8] sm:$0xff] %vm372, %v369
        %v375 = vld [vmem:[#allocation2] sm:$0xff]
        %v376 = vld [vmem:[#allocation2 + $0x8] sm:$0xff]
        %v377 = vld [vmem:[%s2] sm:$0xf]
        %v378 = vld [vmem:[%s2 + $0x4] sm:$0xf]
        %v379 = vld [vmem:[%s2 + $0x8] sm:$0xf]
        %v380 = vld [vmem:[%s2 + $0xc] sm:$0xf]
        %v381 = vld [vmem:[%s2 + $0x10] sm:$0xf]
        %v382 = vld [vmem:[%s2 + $0x14] sm:$0xf]
        %v383 = vld [vmem:[%s2 + $0x18] sm:$0xf]
        %v384 = vld [vmem:[%s2 + $0x1c] sm:$0xf]
        %v385 = vld [vmem:[%s2 + $0x20] sm:$0xf]
        %v386 = vld [vmem:[%s2 + $0x24] sm:$0xf]
        %v387 = vld [vmem:[%s2 + $0x28] sm:$0xf]
        %v388 = vld [vmem:[%s2 + $0x2c] sm:$0xf]
        %v389 = vld [vmem:[%s2 + $0x30] sm:$0xf]
        %v390 = vld [vmem:[%s2 + $0x34] sm:$0xf]
        %v391 = vld [vmem:[%s2 + $0x38] sm:$0xf]
        %v392 = vld [vmem:[%s2 + $0x3c] sm:$0xf]
        %v393 = vld [vmem:[%s3] sm:$0x1]
        %v395 = vlaneseq
        %v396 = vshrl.u32 %v395, 7
        %v397 = vsub.s32 0, %v396
        %v398 = vrot.slane %v393, %v397
        %v416 = vunpack.c.l.b16 %v377
        %v417 = vunpack.c.l.b16 %v378
        %v418 = vunpack.c.l.b16 %v379
        %v419 = vunpack.c.l.b16 %v380
        %v420 = vunpack.c.l.b16 %v381
        %v421 = vunpack.c.l.b16 %v382
        %v422 = vunpack.c.l.b16 %v383
        %v423 = vunpack.c.l.b16 %v384
        %v424 = vunpack.c.l.b16 %v385
        %v425 = vunpack.c.l.b16 %v386
        %v426 = vunpack.c.l.b16 %v387
        %v427 = vunpack.c.l.b16 %v388
        %v428 = vunpack.c.l.b16 %v389
        %v429 = vunpack.c.l.b16 %v390
        %v430 = vunpack.c.l.b16 %v391
        %v431 = vunpack.c.l.b16 %v392
        %v432 = vpack.c.b16 %v417, %v416
        %v433 = vpack.c.b16 %v419, %v418
        %v434 = vpack.c.b16 %v421, %v420
        %v435 = vpack.c.b16 %v423, %v422
        %v436 = vpack.c.b16 %v425, %v424
        %v437 = vpack.c.b16 %v427, %v426
        %v438 = vpack.c.b16 %v429, %v428
        %v439 = vpack.c.b16 %v431, %v430
        %448 = vmatprep.subr.bf16.mxu0 0
        %449 = vmatpush1.bf16.msra.mxu0 %v432
        %450 = vmatprep.subr.bf16.mxu0 0
        %451 = vmatpush1.bf16.msra.mxu0 %v433
        %452 = vmatprep.subr.bf16.mxu0 0
        %453 = vmatpush1.bf16.msra.mxu0 %v434
        %454 = vmatprep.subr.bf16.mxu0 0
        %455 = vmatpush1.bf16.msra.mxu0 %v435
        %456 = vmatprep.subr.bf16.mxu0 0
        %457 = vmatpush1.bf16.msra.mxu0 %v436
        %458 = vmatprep.subr.bf16.mxu0 0
        %459 = vmatpush1.bf16.msra.mxu0 %v437
        %460 = vmatprep.subr.bf16.mxu0 0
        %461 = vmatpush1.bf16.msra.mxu0 %v438
        %462 = vmatprep.subr.bf16.mxu0 0
        %463 = vmatpush1.bf16.msra.mxu0 %v439
        %464 = vmatprep.subr.bf16.mxu0 0
        %465 = vmatpush1.bf16.msra.mxu0 0
        %466 = vmatprep.subr.bf16.mxu0 0
        %467 = vmatpush1.bf16.msra.mxu0 0
        %468 = vmatprep.subr.bf16.mxu0 0
        %469 = vmatpush1.bf16.msra.mxu0 0
        %470 = vmatprep.subr.bf16.mxu0 0
        %471 = vmatpush1.bf16.msra.mxu0 0
        %472 = vmatprep.subr.bf16.mxu0 0
        %473 = vmatpush1.bf16.msra.mxu0 0
        %474 = vmatprep.subr.bf16.mxu0 0
        %475 = vmatpush1.bf16.msra.mxu0 0
        %476 = vmatprep.subr.bf16.mxu0 0
        %477 = vmatpush1.bf16.msra.mxu0 0
        %478 = vmatprep.subr.bf16.mxu0 0
        %479 = vmatpush1.bf16.msra.mxu0 0
        %480 = vmatprep.mubr.bf16.mxu0 0
        %481 = vmatmul.mubr.bf16.gmra.mrb[0].mxu0 %v375
        %v482 = vpop.f32.mrb[0].mxu0
        %v483 = vadd.f32 %v398, %v482
        %v484 = vpop.f32.mrb[0].mxu0
        %v485 = vpop.f32.mrb[0].mxu0
        %v486 = vadd.f32 %v398, %v485
        %v487 = vpop.f32.mrb[0].mxu0
        %488 = vmatprep.mubr.bf16.mxu0 0
        %489 = vmatmul.mubr.bf16.gmra.mrb[0].mxu0 %v376
        %v490 = vpop.f32.mrb[0].mxu0
        %v491 = vadd.f32 %v398, %v490
        %v492 = vpop.f32.mrb[0].mxu0
        %v493 = vpop.f32.mrb[0].mxu0
        %v494 = vadd.f32 %v398, %v493
        %v495 = vpop.f32.mrb[0].mxu0
        %496 = vdwg.mxu0
        %vm497 = vcmask 523264
        %498 = vst.msk [vmem:[%s191] sm:$0xff] %vm497, %v483
        %499 = vst.msk [vmem:[%s191 + $0x8] sm:$0xff] %vm497, %v486
        %500 = vst.msk [vmem:[%s191 + $0x10] sm:$0xff] %vm497, %v491
        %501 = vst.msk [vmem:[%s191 + $0x18] sm:$0xff] %vm497, %v494
        %s502 = sand.u32 %s115, 1
        %s503 = scalar_lea.sflag [#allocation4], %s502
        %s504 = sand.u32 %s115, 1
        %s505 = smul.addr %s504, 32
        %s506 = scalar_lea.vmem [#allocation3], %s505
        // Predicated region
        $region37: #{tpu_custom_call.1} parent=35 // pred_check
          %p507 = pneg %p125
        $region38: #{tpu_custom_call.1} parent=35 // pred_check_branch
          %509 = sbr.rel (%p507) target = $region40
        $region39: #{tpu_custom_call.1} parent=35 // pred_region
          %s510 = smul.u32 4, %s18
          %s512 = ssub.s32 512, 512
          %513 = vsyncadd %s503, %s512
          %s514 = smul.addr %s510, 128
          %s515 = scalar_lea.hbm %s4, %s514
          %s516 = sshll.u32 %s506, 4
          %s517 = int_to_ptr.vmem [resolvable:$true] %s516
          %522 = dma.vmem_to_hbm [thread:$0]  %s517, 512, %s515, %s503, 128, 128, 8
        $region40: #{tpu_custom_call.1} parent=35 // pred_fallthru
          _
      $region36: #{tpu_custom_call.1} parent=5 // pred_fallthru
        _
      %p523 = scmp.le.s32.totalorder 2, %s13
      // Predicated region
      $region41: #{tpu_custom_call.1} parent=5 // pred_check
        %p524 = pneg %p523
      $region42: #{tpu_custom_call.1} parent=5 // pred_check_branch
        %526 = sbr.rel (%p524) target = $region44
      $region43: #{tpu_custom_call.1} parent=5 // pred_region
        %s527 = ssub.s32 %s13, 2
        // Predicated region
        $region45: #{tpu_custom_call.1} parent=43 // pred_check
          %p528 = pneg %p131
        $region46: #{tpu_custom_call.1} parent=43 // pred_check_branch
          %530 = sbr.rel (%p528) target = $region48
        $region47: #{tpu_custom_call.1} parent=43 // pred_region
          %s531 = sand.u32 %s116, 1
          %s532 = scalar_lea.sflag [#allocation4], %s531
          %s533 = sand.u32 %s116, 1
          %s534 = smul.addr %s533, 32
          %s535 = scalar_lea.vmem [#allocation3], %s534
          %536 = dma.done %s532, 512
        $region48: #{tpu_custom_call.1} parent=43 // pred_fallthru
          _
      $region44: #{tpu_custom_call.1} parent=5 // pred_fallthru
        _
    $region6: #{tpu_custom_call.1} parent=1 // loop_footer
      %s17 = sadd.s32 1, %s13
    $region7: #{tpu_custom_call.1} parent=1 // loop_footer_branch
      %12 = sbr.rel target = $region3
    $region8: #{tpu_custom_call.1} parent=1 // loop_exit
      _
    %537 = vsyncpa [#allocation4], 1
    %s538 = scalar_lea.sflag [#allocation4], 1
    %539 = vsyncpa %s538, 1

</llo_original>
